<compile_context>
chip_gen: v5e
topology: v5e:2x2
jax: 0.10.0
libtpu: 0.0.40
codegen_flags: <defaults>
</compile_context>

<pallas_src>
import math

import jax
import jax.numpy as jnp
from jax.experimental import pallas as pl
from jax.experimental.pallas import tpu as pltpu


_SMALL_THRESHOLD = 1 << 16          # below this, plain fused jnp is strictly faster
_TARGET_BLOCK_BYTES = 4 << 20       # ~4 MiB blocks: ~86% of HBM roofline already
_LANE_CANDIDATES = (1024, 896, 768, 640, 512, 384, 256, 128)


def _elementwise_kernel(x_ref, o_ref):
    # In-kernel cast (free VPU work hidden under DMA); accumulate in >= f32.
    acc_dtype = jnp.promote_types(o_ref.dtype, jnp.float32)
    x = x_ref[...].astype(acc_dtype)
    c = jnp.asarray(2.0 / 3.0, dtype=acc_dtype)
    o_ref[...] = (x * c + c).astype(o_ref.dtype)


def _round_up(n, m):
    return ((n + m - 1) // m) * m


def _sublane(dtype):
    bits = jnp.dtype(dtype).itemsize * 8
    if bits >= 32:
        return 8
    if bits == 16:
        return 16
    return 32


def _tensorcores_per_device():
    """Heuristic: 2 TensorCores on v4 / v5p / v7x, 1 on v5e / v6e."""
    try:
        kind = jax.devices()[0].device_kind.lower()
    except Exception:
        return 1
    if "v7" in kind or "tpu7" in kind or "v4" in kind:
        return 2
    if "v5" in kind and "lite" not in kind and "v5e" not in kind:
        return 2  # v5p megacore
    return 1


def pt_module_forward(x):
    """Computes ((x * 2 + 5 - 1 - 2) / 3) elementwise, matching PtModule.forward."""
    orig_shape = x.shape

    # torch's `/ 3` is true division -> float result; promote non-float inputs.
    if jnp.issubdtype(x.dtype, jnp.floating):
        out_dtype = x.dtype
    else:
        out_dtype = jnp.float32

    total = math.prod(orig_shape) if orig_shape else 1

    # Small-input fallback: pallas_call launch overhead dwarfs the work.
    if total < _SMALL_THRESHOLD:
        acc_dtype = jnp.promote_types(out_dtype, jnp.float32)
        c = jnp.asarray(2.0 / 3.0, dtype=acc_dtype)
        return (x.astype(acc_dtype) * c + c).astype(out_dtype)

    x_flat = x.reshape(total)  # original dtype; cast happens in-kernel

    # Lane-dense layout with NO padding when possible: pick the largest
    # multiple-of-128 divisor of `total` as the lane width (reshape is free).
    lanes = None
    for cand in _LANE_CANDIDATES:
        if total % cand == 0:
            lanes = cand
            break

    needs_slice = False
    if lanes is None:
        # Rare ragged case: minimal pad to a multiple of 128 lanes.
        lanes = 128
        rows = pl.cdiv(total, lanes)
        padded_total = rows * lanes
        x_flat = jnp.pad(x_flat, (0, padded_total - total))
        needs_slice = True
    else:
        rows = total // lanes

    x2d = x_flat.reshape(rows, lanes)

    # Dtype-aware sublane granularity (8 for 32-bit, 16 for bf16, 32 for int8/bool).
    sub = max(_sublane(x.dtype), _sublane(out_dtype))

    # ~4 MiB blocks sized by the wider of input/output element widths.
    itemsize = max(jnp.dtype(x.dtype).itemsize, jnp.dtype(out_dtype).itemsize)
    max_tile_rows = max(sub, (_TARGET_BLOCK_BYTES // (lanes * itemsize)) // sub * sub)
    tile_rows = min(max_tile_rows, _round_up(rows, sub))

    # Only split into multiple grid steps on multi-TensorCore parts (v4/v5p/v7x);
    # on 1-TC parts extra steps are pure pipeline overhead.
    n_tc = _tensorcores_per_device()
    if n_tc > 1:
        steps = pl.cdiv(rows, tile_rows)
        if steps % n_tc != 0:
            target_steps = _round_up(steps, n_tc)
            cand_rows = _round_up(pl.cdiv(rows, target_steps), sub)
            if cand_rows >= sub:
                tile_rows = min(tile_rows, cand_rows)

    grid = (pl.cdiv(rows, tile_rows),)  # ragged last block is masked by Pallas

    out2d = pl.pallas_call(
        _elementwise_kernel,
        out_shape=jax.ShapeDtypeStruct((rows, lanes), out_dtype),
        grid_spec=pltpu.PrefetchScalarGridSpec(
            num_scalar_prefetch=0,
            grid=grid,
            in_specs=[pl.BlockSpec((tile_rows, lanes), lambda i: (i, 0))],
            out_specs=pl.BlockSpec((tile_rows, lanes), lambda i: (i, 0)),
        ),
        compiler_params=pltpu.CompilerParams(
            dimension_semantics=("parallel",),
            vmem_limit_bytes=32 << 20,  # default on v6e/v7x; raise over v5e's 16 MiB
        ),
    )(x2d)

    out_flat = out2d.reshape(rows * lanes)
    if needs_slice:
        out_flat = out_flat[:total]
    return out_flat.reshape(orig_shape)


def _reference(x):
    out = x * 2
    out = out + 5
    for i in range(2):
        out = out - (i + 1)
    out = out / 3
    return out


if __name__ == "__main__":
    key = jax.random.PRNGKey(0)
    k1, k2 = jax.random.split(key)

    # Shape implied by the module spec (2048 elements) -> fused-XLA fallback path.
    x_small = jax.random.normal(k1, (2, 4, 16, 16), dtype=jnp.float32)
    out_small = jax.block_until_ready(pt_module_forward(x_small))
    ref_small = _reference(x_small)
    assert out_small.shape == ref_small.shape and out_small.dtype == ref_small.dtype
    assert jnp.allclose(out_small, ref_small, atol=1e-6, rtol=1e-6)

    # Larger input -> exercises the Pallas kernel path (131072 elements).
    x_big = jax.random.normal(k2, (8, 4, 64, 64), dtype=jnp.float32)
    out_big = jax.block_until_ready(pt_module_forward(x_big))
    ref_big = _reference(x_big)
    assert out_big.shape == ref_big.shape and out_big.dtype == ref_big.dtype
    assert jnp.allclose(out_big, ref_big, atol=1e-6, rtol=1e-6)

    print("KERNEL_OK")
</pallas_src>

<mosaic_0001>
module attributes {stable_mosaic.version = 11 : i64} {
  func.func @_elementwise_kernel(%arg0: i32, %arg1: memref<128x1024xf32, #tpu.memory_space<vmem>>, %arg2: memref<128x1024xf32, #tpu.memory_space<vmem>>) attributes {dimension_semantics = [#tpu.dimension_semantics<parallel>], iteration_bounds = array<i64: 1>, scalar_prefetch = 0 : i64, scratch_operands = 0 : i64, tpu.core_type = #tpu.core_type<tc>, window_params = [{transform_indices = @transform_0, window_bounds = array<i64: 128, 1024>}, {transform_indices = @transform_1, window_bounds = array<i64: 128, 1024>}]} {
    %c0 = arith.constant 0 : index
    %c0_0 = arith.constant 0 : index
    %0 = vector.load %arg1[%c0, %c0_0] : memref<128x1024xf32, #tpu.memory_space<vmem>>, vector<128x1024xf32>
    %cst = arith.constant 0.666666686 : f32
    %1 = vector.broadcast %cst : f32 to vector<128x1024xf32>
    %2 = arith.mulf %0, %1 : vector<128x1024xf32>
    %cst_1 = arith.constant 0.666666686 : f32
    %3 = vector.broadcast %cst_1 : f32 to vector<128x1024xf32>
    %4 = arith.addf %2, %3 : vector<128x1024xf32>
    %c0_2 = arith.constant 0 : index
    %c0_3 = arith.constant 0 : index
    %5 = vector.load %arg2[%c0_2, %c0_3] : memref<128x1024xf32, #tpu.memory_space<vmem>>, vector<128x1024xf32>
    tpu.vector_store %arg2[%c0_2, %c0_3], %4 {strides = array<i32>} : memref<128x1024xf32, #tpu.memory_space<vmem>>, vector<128x1024xf32>,
    return
  }
  func.func @transform_0(%arg0: i32) -> (i32, i32) {
    %c0_i32 = arith.constant 0 : i32
    %c0_i32_0 = arith.constant 0 : i32
    return %arg0, %c0_i32 : i32, i32
  }
  func.func @transform_1(%arg0: i32) -> (i32, i32) {
    %c0_i32 = arith.constant 0 : i32
    %c0_i32_0 = arith.constant 0 : i32
    return %arg0, %c0_i32 : i32, i32
  }
}

</mosaic_0001>

<llo_original>
// kernel: tpu_custom_call.1
$region0: #{tpu_custom_call.1}
  #allocation0 [shape = 'u32[]', space=smem, size = 0x4, offset = 0x4, fixed_abs, tag = 'smem constant byte address 0x4 - core index']
  #allocation1 [shape = 'u32[72,128]{1,0:T(1,128)}', space=vmem, size = 0x9000, scoped, tag = 'internal scratch']
  %s0 = inlined_call_operand.hbm [shape: f32[128,1024], index: 0, kind: input, shape index: {}]
  %s1 = inlined_call_operand.hbm [shape: f32[128,1024], index: 1, kind: output, shape index: {}]
  %s2 = sld [smem:[#allocation0]]
  $region18: #{tpu_custom_call.1} parent=0
    _
  %s4 = ssub.s32 1, %s2
  %s5 = scalar_select 0, %s4, %s2
  $region1: #{tpu_custom_call.1} parent=0
    #allocation2 [shape = 'u8[524288]{0}', space=vmem, size = 0x80000, scoped, tag = 'input window, operand 0, single buffered']
    #allocation3 [shape = 's32[1]{0}', space=sflag, size = 0x4, scoped, tag = 'scoped memory for tpu_custom_call.1']
    #allocation4 [shape = 's32[1]{0}', space=sflag, size = 0x4, scoped, tag = 'scoped memory for tpu_custom_call.1']
    #allocation5 [shape = 'u8[524288]{0}', space=vmem, size = 0x80000, scoped, tag = 'output window, operand 0, single buffered']
    %6 = vsyncpa [#allocation3], 0
    %7 = vsyncpa [#allocation4], 0
    // Predicated region
    $region2: #{tpu_custom_call.1} parent=1 // pred_check
      _
    $region3: #{tpu_custom_call.1} parent=1 // pred_check_branch
      %9 = sbr.rel (0) target = $region5
    $region4: #{tpu_custom_call.1} parent=1 // pred_region
      %11 = vsyncadd [#allocation3], 0
      %s12 = sshll.u32 %s0, 4
      %s13 = int_to_ptr.hbm [resolvable:$true] %s12
      %s14 = sshll.u32 [#allocation2], 4
      %s15 = int_to_ptr.vmem [resolvable:$true] %s14
      %20 = dma.hbm_to_vmem [thread:$0]  %s13, 16384, %s15, [#allocation3], 1024, 1024, 64
    $region5: #{tpu_custom_call.1} parent=1 // pred_fallthru
      _
    // Predicated region
    $region6: #{tpu_custom_call.1} parent=1 // pred_check
      _
    $region7: #{tpu_custom_call.1} parent=1 // pred_check_branch
      %22 = sbr.rel (0) target = $region9
    $region8: #{tpu_custom_call.1} parent=1 // pred_region
      %24 = dma.done [#allocation3], 16384
    $region9: #{tpu_custom_call.1} parent=1 // pred_fallthru
      _
    %v25 = vld [vmem:[#allocation2] sm:$0xff]
    %v26 = vld [vmem:[#allocation2 + $0x8] sm:$0xff]
    %v27 = vld [vmem:[#allocation2 + $0x10] sm:$0xff]
    %v28 = vld [vmem:[#allocation2 + $0x18] sm:$0xff]
    %v29 = vld [vmem:[#allocation2 + $0x20] sm:$0xff]
    %v30 = vld [vmem:[#allocation2 + $0x28] sm:$0xff]
    %v31 = vld [vmem:[#allocation2 + $0x30] sm:$0xff]
    %v32 = vld [vmem:[#allocation2 + $0x38] sm:$0xff]
    %v33 = vld [vmem:[#allocation2 + $0x40] sm:$0xff]
    %v34 = vld [vmem:[#allocation2 + $0x48] sm:$0xff]
    %v35 = vld [vmem:[#allocation2 + $0x50] sm:$0xff]
    %v36 = vld [vmem:[#allocation2 + $0x58] sm:$0xff]
    %v37 = vld [vmem:[#allocation2 + $0x60] sm:$0xff]
    %v38 = vld [vmem:[#allocation2 + $0x68] sm:$0xff]
    %v39 = vld [vmem:[#allocation2 + $0x70] sm:$0xff]
    %v40 = vld [vmem:[#allocation2 + $0x78] sm:$0xff]
    %v41 = vld [vmem:[#allocation2 + $0x80] sm:$0xff]
    %v42 = vld [vmem:[#allocation2 + $0x88] sm:$0xff]
    %v43 = vld [vmem:[#allocation2 + $0x90] sm:$0xff]
    %v44 = vld [vmem:[#allocation2 + $0x98] sm:$0xff]
    %v45 = vld [vmem:[#allocation2 + $0xa0] sm:$0xff]
    %v46 = vld [vmem:[#allocation2 + $0xa8] sm:$0xff]
    %v47 = vld [vmem:[#allocation2 + $0xb0] sm:$0xff]
    %v48 = vld [vmem:[#allocation2 + $0xb8] sm:$0xff]
    %v49 = vld [vmem:[#allocation2 + $0xc0] sm:$0xff]
    %v50 = vld [vmem:[#allocation2 + $0xc8] sm:$0xff]
    %v51 = vld [vmem:[#allocation2 + $0xd0] sm:$0xff]
    %v52 = vld [vmem:[#allocation2 + $0xd8] sm:$0xff]
    %v53 = vld [vmem:[#allocation2 + $0xe0] sm:$0xff]
    %v54 = vld [vmem:[#allocation2 + $0xe8] sm:$0xff]
    %v55 = vld [vmem:[#allocation2 + $0xf0] sm:$0xff]
    %v56 = vld [vmem:[#allocation2 + $0xf8] sm:$0xff]
    %v57 = vld [vmem:[#allocation2 + $0x100] sm:$0xff]
    %v58 = vld [vmem:[#allocation2 + $0x108] sm:$0xff]
    %v59 = vld [vmem:[#allocation2 + $0x110] sm:$0xff]
    %v60 = vld [vmem:[#allocation2 + $0x118] sm:$0xff]
    %v61 = vld [vmem:[#allocation2 + $0x120] sm:$0xff]
    %v62 = vld [vmem:[#allocation2 + $0x128] sm:$0xff]
    %v63 = vld [vmem:[#allocation2 + $0x130] sm:$0xff]
    %v64 = vld [vmem:[#allocation2 + $0x138] sm:$0xff]
    %v65 = vld [vmem:[#allocation2 + $0x140] sm:$0xff]
    %v66 = vld [vmem:[#allocation2 + $0x148] sm:$0xff]
    %v67 = vld [vmem:[#allocation2 + $0x150] sm:$0xff]
    %v68 = vld [vmem:[#allocation2 + $0x158] sm:$0xff]
    %v69 = vld [vmem:[#allocation2 + $0x160] sm:$0xff]
    %v70 = vld [vmem:[#allocation2 + $0x168] sm:$0xff]
    %v71 = vld [vmem:[#allocation2 + $0x170] sm:$0xff]
    %v72 = vld [vmem:[#allocation2 + $0x178] sm:$0xff]
    %v73 = vld [vmem:[#allocation2 + $0x180] sm:$0xff]
    %v74 = vld [vmem:[#allocation2 + $0x188] sm:$0xff]
    %v75 = vld [vmem:[#allocation2 + $0x190] sm:$0xff]
    %v76 = vld [vmem:[#allocation2 + $0x198] sm:$0xff]
    %v77 = vld [vmem:[#allocation2 + $0x1a0] sm:$0xff]
    %v78 = vld [vmem:[#allocation2 + $0x1a8] sm:$0xff]
    %v79 = vld [vmem:[#allocation2 + $0x1b0] sm:$0xff]
    %v80 = vld [vmem:[#allocation2 + $0x1b8] sm:$0xff]
    %v81 = vld [vmem:[#allocation2 + $0x1c0] sm:$0xff]
    %v82 = vld [vmem:[#allocation2 + $0x1c8] sm:$0xff]
    %v83 = vld [vmem:[#allocation2 + $0x1d0] sm:$0xff]
    %v84 = vld [vmem:[#allocation2 + $0x1d8] sm:$0xff]
    %v85 = vld [vmem:[#allocation2 + $0x1e0] sm:$0xff]
    %v86 = vld [vmem:[#allocation2 + $0x1e8] sm:$0xff]
    %v87 = vld [vmem:[#allocation2 + $0x1f0] sm:$0xff]
    %v88 = vld [vmem:[#allocation2 + $0x1f8] sm:$0xff]
    %v89 = vld [vmem:[#allocation2 + $0x200] sm:$0xff]
    %v90 = vld [vmem:[#allocation2 + $0x208] sm:$0xff]
    %v91 = vld [vmem:[#allocation2 + $0x210] sm:$0xff]
    %v92 = vld [vmem:[#allocation2 + $0x218] sm:$0xff]
    %v93 = vld [vmem:[#allocation2 + $0x220] sm:$0xff]
    %v94 = vld [vmem:[#allocation2 + $0x228] sm:$0xff]
    %v95 = vld [vmem:[#allocation2 + $0x230] sm:$0xff]
    %v96 = vld [vmem:[#allocation2 + $0x238] sm:$0xff]
    %v97 = vld [vmem:[#allocation2 + $0x240] sm:$0xff]
    %v98 = vld [vmem:[#allocation2 + $0x248] sm:$0xff]
    %v99 = vld [vmem:[#allocation2 + $0x250] sm:$0xff]
    %v100 = vld [vmem:[#allocation2 + $0x258] sm:$0xff]
    %v101 = vld [vmem:[#allocation2 + $0x260] sm:$0xff]
    %v102 = vld [vmem:[#allocation2 + $0x268] sm:$0xff]
    %v103 = vld [vmem:[#allocation2 + $0x270] sm:$0xff]
    %v104 = vld [vmem:[#allocation2 + $0x278] sm:$0xff]
    %v105 = vld [vmem:[#allocation2 + $0x280] sm:$0xff]
    %v106 = vld [vmem:[#allocation2 + $0x288] sm:$0xff]
    %v107 = vld [vmem:[#allocation2 + $0x290] sm:$0xff]
    %v108 = vld [vmem:[#allocation2 + $0x298] sm:$0xff]
    %v109 = vld [vmem:[#allocation2 + $0x2a0] sm:$0xff]
    %v110 = vld [vmem:[#allocation2 + $0x2a8] sm:$0xff]
    %v111 = vld [vmem:[#allocation2 + $0x2b0] sm:$0xff]
    %v112 = vld [vmem:[#allocation2 + $0x2b8] sm:$0xff]
    %v113 = vld [vmem:[#allocation2 + $0x2c0] sm:$0xff]
    %v114 = vld [vmem:[#allocation2 + $0x2c8] sm:$0xff]
    %v115 = vld [vmem:[#allocation2 + $0x2d0] sm:$0xff]
    %v116 = vld [vmem:[#allocation2 + $0x2d8] sm:$0xff]
    %v117 = vld [vmem:[#allocation2 + $0x2e0] sm:$0xff]
    %v118 = vld [vmem:[#allocation2 + $0x2e8] sm:$0xff]
    %v119 = vld [vmem:[#allocation2 + $0x2f0] sm:$0xff]
    %v120 = vld [vmem:[#allocation2 + $0x2f8] sm:$0xff]
    %v121 = vld [vmem:[#allocation2 + $0x300] sm:$0xff]
    %v122 = vld [vmem:[#allocation2 + $0x308] sm:$0xff]
    %v123 = vld [vmem:[#allocation2 + $0x310] sm:$0xff]
    %v124 = vld [vmem:[#allocation2 + $0x318] sm:$0xff]
    %v125 = vld [vmem:[#allocation2 + $0x320] sm:$0xff]
    %v126 = vld [vmem:[#allocation2 + $0x328] sm:$0xff]
    %v127 = vld [vmem:[#allocation2 + $0x330] sm:$0xff]
    %v128 = vld [vmem:[#allocation2 + $0x338] sm:$0xff]
    %v129 = vld [vmem:[#allocation2 + $0x340] sm:$0xff]
    %v130 = vld [vmem:[#allocation2 + $0x348] sm:$0xff]
    %v131 = vld [vmem:[#allocation2 + $0x350] sm:$0xff]
    %v132 = vld [vmem:[#allocation2 + $0x358] sm:$0xff]
    %v133 = vld [vmem:[#allocation2 + $0x360] sm:$0xff]
    %v134 = vld [vmem:[#allocation2 + $0x368] sm:$0xff]
    %v135 = vld [vmem:[#allocation2 + $0x370] sm:$0xff]
    %v136 = vld [vmem:[#allocation2 + $0x378] sm:$0xff]
    %v137 = vld [vmem:[#allocation2 + $0x380] sm:$0xff]
    %v138 = vld [vmem:[#allocation2 + $0x388] sm:$0xff]
    %v139 = vld [vmem:[#allocation2 + $0x390] sm:$0xff]
    %v140 = vld [vmem:[#allocation2 + $0x398] sm:$0xff]
    %v141 = vld [vmem:[#allocation2 + $0x3a0] sm:$0xff]
    %v142 = vld [vmem:[#allocation2 + $0x3a8] sm:$0xff]
    %v143 = vld [vmem:[#allocation2 + $0x3b0] sm:$0xff]
    %v144 = vld [vmem:[#allocation2 + $0x3b8] sm:$0xff]
    %v145 = vld [vmem:[#allocation2 + $0x3c0] sm:$0xff]
    %v146 = vld [vmem:[#allocation2 + $0x3c8] sm:$0xff]
    %v147 = vld [vmem:[#allocation2 + $0x3d0] sm:$0xff]
    %v148 = vld [vmem:[#allocation2 + $0x3d8] sm:$0xff]
    %v149 = vld [vmem:[#allocation2 + $0x3e0] sm:$0xff]
    %v150 = vld [vmem:[#allocation2 + $0x3e8] sm:$0xff]
    %v151 = vld [vmem:[#allocation2 + $0x3f0] sm:$0xff]
    %v152 = vld [vmem:[#allocation2 + $0x3f8] sm:$0xff]
    %v153 = vmul.f32 %v25, 0.6666667
    %v154 = vmul.f32 %v26, 0.6666667
    %v155 = vmul.f32 %v27, 0.6666667
    %v156 = vmul.f32 %v28, 0.6666667
    %v157 = vmul.f32 %v29, 0.6666667
    %v158 = vmul.f32 %v30, 0.6666667
    %v159 = vmul.f32 %v31, 0.6666667
    %v160 = vmul.f32 %v32, 0.6666667
    %v161 = vmul.f32 %v33, 0.6666667
    %v162 = vmul.f32 %v34, 0.6666667
    %v163 = vmul.f32 %v35, 0.6666667
    %v164 = vmul.f32 %v36, 0.6666667
    %v165 = vmul.f32 %v37, 0.6666667
    %v166 = vmul.f32 %v38, 0.6666667
    %v167 = vmul.f32 %v39, 0.6666667
    %v168 = vmul.f32 %v40, 0.6666667
    %v169 = vmul.f32 %v41, 0.6666667
    %v170 = vmul.f32 %v42, 0.6666667
    %v171 = vmul.f32 %v43, 0.6666667
    %v172 = vmul.f32 %v44, 0.6666667
    %v173 = vmul.f32 %v45, 0.6666667
    %v174 = vmul.f32 %v46, 0.6666667
    %v175 = vmul.f32 %v47, 0.6666667
    %v176 = vmul.f32 %v48, 0.6666667
    %v177 = vmul.f32 %v49, 0.6666667
    %v178 = vmul.f32 %v50, 0.6666667
    %v179 = vmul.f32 %v51, 0.6666667
    %v180 = vmul.f32 %v52, 0.6666667
    %v181 = vmul.f32 %v53, 0.6666667
    %v182 = vmul.f32 %v54, 0.6666667
    %v183 = vmul.f32 %v55, 0.6666667
    %v184 = vmul.f32 %v56, 0.6666667
    %v185 = vmul.f32 %v57, 0.6666667
    %v186 = vmul.f32 %v58, 0.6666667
    %v187 = vmul.f32 %v59, 0.6666667
    %v188 = vmul.f32 %v60, 0.6666667
    %v189 = vmul.f32 %v61, 0.6666667
    %v190 = vmul.f32 %v62, 0.6666667
    %v191 = vmul.f32 %v63, 0.6666667
    %v192 = vmul.f32 %v64, 0.6666667
    %v193 = vmul.f32 %v65, 0.6666667
    %v194 = vmul.f32 %v66, 0.6666667
    %v195 = vmul.f32 %v67, 0.6666667
    %v196 = vmul.f32 %v68, 0.6666667
    %v197 = vmul.f32 %v69, 0.6666667
    %v198 = vmul.f32 %v70, 0.6666667
    %v199 = vmul.f32 %v71, 0.6666667
    %v200 = vmul.f32 %v72, 0.6666667
    %v201 = vmul.f32 %v73, 0.6666667
    %v202 = vmul.f32 %v74, 0.6666667
    %v203 = vmul.f32 %v75, 0.6666667
    %v204 = vmul.f32 %v76, 0.6666667
    %v205 = vmul.f32 %v77, 0.6666667
    %v206 = vmul.f32 %v78, 0.6666667
    %v207 = vmul.f32 %v79, 0.6666667
    %v208 = vmul.f32 %v80, 0.6666667
    %v209 = vmul.f32 %v81, 0.6666667
    %v210 = vmul.f32 %v82, 0.6666667
    %v211 = vmul.f32 %v83, 0.6666667
    %v212 = vmul.f32 %v84, 0.6666667
    %v213 = vmul.f32 %v85, 0.6666667
    %v214 = vmul.f32 %v86, 0.6666667
    %v215 = vmul.f32 %v87, 0.6666667
    %v216 = vmul.f32 %v88, 0.6666667
    %v217 = vmul.f32 %v89, 0.6666667
    %v218 = vmul.f32 %v90, 0.6666667
    %v219 = vmul.f32 %v91, 0.6666667
    %v220 = vmul.f32 %v92, 0.6666667
    %v221 = vmul.f32 %v93, 0.6666667
    %v222 = vmul.f32 %v94, 0.6666667
    %v223 = vmul.f32 %v95, 0.6666667
    %v224 = vmul.f32 %v96, 0.6666667
    %v225 = vmul.f32 %v97, 0.6666667
    %v226 = vmul.f32 %v98, 0.6666667
    %v227 = vmul.f32 %v99, 0.6666667
    %v228 = vmul.f32 %v100, 0.6666667
    %v229 = vmul.f32 %v101, 0.6666667
    %v230 = vmul.f32 %v102, 0.6666667
    %v231 = vmul.f32 %v103, 0.6666667
    %v232 = vmul.f32 %v104, 0.6666667
    %v233 = vmul.f32 %v105, 0.6666667
    %v234 = vmul.f32 %v106, 0.6666667
    %v235 = vmul.f32 %v107, 0.6666667
    %v236 = vmul.f32 %v108, 0.6666667
    %v237 = vmul.f32 %v109, 0.6666667
    %v238 = vmul.f32 %v110, 0.6666667
    %v239 = vmul.f32 %v111, 0.6666667
    %v240 = vmul.f32 %v112, 0.6666667
    %v241 = vmul.f32 %v113, 0.6666667
    %v242 = vmul.f32 %v114, 0.6666667
    %v243 = vmul.f32 %v115, 0.6666667
    %v244 = vmul.f32 %v116, 0.6666667
    %v245 = vmul.f32 %v117, 0.6666667
    %v246 = vmul.f32 %v118, 0.6666667
    %v247 = vmul.f32 %v119, 0.6666667
    %v248 = vmul.f32 %v120, 0.6666667
    %v249 = vmul.f32 %v121, 0.6666667
    %v250 = vmul.f32 %v122, 0.6666667
    %v251 = vmul.f32 %v123, 0.6666667
    %v252 = vmul.f32 %v124, 0.6666667
    %v253 = vmul.f32 %v125, 0.6666667
    %v254 = vmul.f32 %v126, 0.6666667
    %v255 = vmul.f32 %v127, 0.6666667
    %v256 = vmul.f32 %v128, 0.6666667
    %v257 = vmul.f32 %v129, 0.6666667
    %v258 = vmul.f32 %v130, 0.6666667
    %v259 = vmul.f32 %v131, 0.6666667
    %v260 = vmul.f32 %v132, 0.6666667
    %v261 = vmul.f32 %v133, 0.6666667
    %v262 = vmul.f32 %v134, 0.6666667
    %v263 = vmul.f32 %v135, 0.6666667
    %v264 = vmul.f32 %v136, 0.6666667
    %v265 = vmul.f32 %v137, 0.6666667
    %v266 = vmul.f32 %v138, 0.6666667
    %v267 = vmul.f32 %v139, 0.6666667
    %v268 = vmul.f32 %v140, 0.6666667
    %v269 = vmul.f32 %v141, 0.6666667
    %v270 = vmul.f32 %v142, 0.6666667
    %v271 = vmul.f32 %v143, 0.6666667
    %v272 = vmul.f32 %v144, 0.6666667
    %v273 = vmul.f32 %v145, 0.6666667
    %v274 = vmul.f32 %v146, 0.6666667
    %v275 = vmul.f32 %v147, 0.6666667
    %v276 = vmul.f32 %v148, 0.6666667
    %v277 = vmul.f32 %v149, 0.6666667
    %v278 = vmul.f32 %v150, 0.6666667
    %v279 = vmul.f32 %v151, 0.6666667
    %v280 = vmul.f32 %v152, 0.6666667
    %v281 = vadd.f32 %v153, 0.6666667
    %v282 = vadd.f32 %v154, 0.6666667
    %v283 = vadd.f32 %v155, 0.6666667
    %v284 = vadd.f32 %v156, 0.6666667
    %v285 = vadd.f32 %v157, 0.6666667
    %v286 = vadd.f32 %v158, 0.6666667
    %v287 = vadd.f32 %v159, 0.6666667
    %v288 = vadd.f32 %v160, 0.6666667
    %v289 = vadd.f32 %v161, 0.6666667
    %v290 = vadd.f32 %v162, 0.6666667
    %v291 = vadd.f32 %v163, 0.6666667
    %v292 = vadd.f32 %v164, 0.6666667
    %v293 = vadd.f32 %v165, 0.6666667
    %v294 = vadd.f32 %v166, 0.6666667
    %v295 = vadd.f32 %v167, 0.6666667
    %v296 = vadd.f32 %v168, 0.6666667
    %v297 = vadd.f32 %v169, 0.6666667
    %v298 = vadd.f32 %v170, 0.6666667
    %v299 = vadd.f32 %v171, 0.6666667
    %v300 = vadd.f32 %v172, 0.6666667
    %v301 = vadd.f32 %v173, 0.6666667
    %v302 = vadd.f32 %v174, 0.6666667
    %v303 = vadd.f32 %v175, 0.6666667
    %v304 = vadd.f32 %v176, 0.6666667
    %v305 = vadd.f32 %v177, 0.6666667
    %v306 = vadd.f32 %v178, 0.6666667
    %v307 = vadd.f32 %v179, 0.6666667
    %v308 = vadd.f32 %v180, 0.6666667
    %v309 = vadd.f32 %v181, 0.6666667
    %v310 = vadd.f32 %v182, 0.6666667
    %v311 = vadd.f32 %v183, 0.6666667
    %v312 = vadd.f32 %v184, 0.6666667
    %v313 = vadd.f32 %v185, 0.6666667
    %v314 = vadd.f32 %v186, 0.6666667
    %v315 = vadd.f32 %v187, 0.6666667
    %v316 = vadd.f32 %v188, 0.6666667
    %v317 = vadd.f32 %v189, 0.6666667
    %v318 = vadd.f32 %v190, 0.6666667
    %v319 = vadd.f32 %v191, 0.6666667
    %v320 = vadd.f32 %v192, 0.6666667
    %v321 = vadd.f32 %v193, 0.6666667
    %v322 = vadd.f32 %v194, 0.6666667
    %v323 = vadd.f32 %v195, 0.6666667
    %v324 = vadd.f32 %v196, 0.6666667
    %v325 = vadd.f32 %v197, 0.6666667
    %v326 = vadd.f32 %v198, 0.6666667
    %v327 = vadd.f32 %v199, 0.6666667
    %v328 = vadd.f32 %v200, 0.6666667
    %v329 = vadd.f32 %v201, 0.6666667
    %v330 = vadd.f32 %v202, 0.6666667
    %v331 = vadd.f32 %v203, 0.6666667
    %v332 = vadd.f32 %v204, 0.6666667
    %v333 = vadd.f32 %v205, 0.6666667
    %v334 = vadd.f32 %v206, 0.6666667
    %v335 = vadd.f32 %v207, 0.6666667
    %v336 = vadd.f32 %v208, 0.6666667
    %v337 = vadd.f32 %v209, 0.6666667
    %v338 = vadd.f32 %v210, 0.6666667
    %v339 = vadd.f32 %v211, 0.6666667
    %v340 = vadd.f32 %v212, 0.6666667
    %v341 = vadd.f32 %v213, 0.6666667
    %v342 = vadd.f32 %v214, 0.6666667
    %v343 = vadd.f32 %v215, 0.6666667
    %v344 = vadd.f32 %v216, 0.6666667
    %v345 = vadd.f32 %v217, 0.6666667
    %v346 = vadd.f32 %v218, 0.6666667
    %v347 = vadd.f32 %v219, 0.6666667
    %v348 = vadd.f32 %v220, 0.6666667
    %v349 = vadd.f32 %v221, 0.6666667
    %v350 = vadd.f32 %v222, 0.6666667
    %v351 = vadd.f32 %v223, 0.6666667
    %v352 = vadd.f32 %v224, 0.6666667
    %v353 = vadd.f32 %v225, 0.6666667
    %v354 = vadd.f32 %v226, 0.6666667
    %v355 = vadd.f32 %v227, 0.6666667
    %v356 = vadd.f32 %v228, 0.6666667
    %v357 = vadd.f32 %v229, 0.6666667
    %v358 = vadd.f32 %v230, 0.6666667
    %v359 = vadd.f32 %v231, 0.6666667
    %v360 = vadd.f32 %v232, 0.6666667
    %v361 = vadd.f32 %v233, 0.6666667
    %v362 = vadd.f32 %v234, 0.6666667
    %v363 = vadd.f32 %v235, 0.6666667
    %v364 = vadd.f32 %v236, 0.6666667
    %v365 = vadd.f32 %v237, 0.6666667
    %v366 = vadd.f32 %v238, 0.6666667
    %v367 = vadd.f32 %v239, 0.6666667
    %v368 = vadd.f32 %v240, 0.6666667
    %v369 = vadd.f32 %v241, 0.6666667
    %v370 = vadd.f32 %v242, 0.6666667
    %v371 = vadd.f32 %v243, 0.6666667
    %v372 = vadd.f32 %v244, 0.6666667
    %v373 = vadd.f32 %v245, 0.6666667
    %v374 = vadd.f32 %v246, 0.6666667
    %v375 = vadd.f32 %v247, 0.6666667
    %v376 = vadd.f32 %v248, 0.6666667
    %v377 = vadd.f32 %v249, 0.6666667
    %v378 = vadd.f32 %v250, 0.6666667
    %v379 = vadd.f32 %v251, 0.6666667
    %v380 = vadd.f32 %v252, 0.6666667
    %v381 = vadd.f32 %v253, 0.6666667
    %v382 = vadd.f32 %v254, 0.6666667
    %v383 = vadd.f32 %v255, 0.6666667
    %v384 = vadd.f32 %v256, 0.6666667
    %v385 = vadd.f32 %v257, 0.6666667
    %v386 = vadd.f32 %v258, 0.6666667
    %v387 = vadd.f32 %v259, 0.6666667
    %v388 = vadd.f32 %v260, 0.6666667
    %v389 = vadd.f32 %v261, 0.6666667
    %v390 = vadd.f32 %v262, 0.6666667
    %v391 = vadd.f32 %v263, 0.6666667
    %v392 = vadd.f32 %v264, 0.6666667
    %v393 = vadd.f32 %v265, 0.6666667
    %v394 = vadd.f32 %v266, 0.6666667
    %v395 = vadd.f32 %v267, 0.6666667
    %v396 = vadd.f32 %v268, 0.6666667
    %v397 = vadd.f32 %v269, 0.6666667
    %v398 = vadd.f32 %v270, 0.6666667
    %v399 = vadd.f32 %v271, 0.6666667
    %v400 = vadd.f32 %v272, 0.6666667
    %v401 = vadd.f32 %v273, 0.6666667
    %v402 = vadd.f32 %v274, 0.6666667
    %v403 = vadd.f32 %v275, 0.6666667
    %v404 = vadd.f32 %v276, 0.6666667
    %v405 = vadd.f32 %v277, 0.6666667
    %v406 = vadd.f32 %v278, 0.6666667
    %v407 = vadd.f32 %v279, 0.6666667
    %v408 = vadd.f32 %v280, 0.6666667
    %409 = vst [vmem:[#allocation5] sm:$0xff] %v281
    %410 = vst [vmem:[#allocation5 + $0x8] sm:$0xff] %v282
    %411 = vst [vmem:[#allocation5 + $0x10] sm:$0xff] %v283
    %412 = vst [vmem:[#allocation5 + $0x18] sm:$0xff] %v284
    %413 = vst [vmem:[#allocation5 + $0x20] sm:$0xff] %v285
    %414 = vst [vmem:[#allocation5 + $0x28] sm:$0xff] %v286
    %415 = vst [vmem:[#allocation5 + $0x30] sm:$0xff] %v287
    %416 = vst [vmem:[#allocation5 + $0x38] sm:$0xff] %v288
    %417 = vst [vmem:[#allocation5 + $0x40] sm:$0xff] %v289
    %418 = vst [vmem:[#allocation5 + $0x48] sm:$0xff] %v290
    %419 = vst [vmem:[#allocation5 + $0x50] sm:$0xff] %v291
    %420 = vst [vmem:[#allocation5 + $0x58] sm:$0xff] %v292
    %421 = vst [vmem:[#allocation5 + $0x60] sm:$0xff] %v293
    %422 = vst [vmem:[#allocation5 + $0x68] sm:$0xff] %v294
    %423 = vst [vmem:[#allocation5 + $0x70] sm:$0xff] %v295
    %424 = vst [vmem:[#allocation5 + $0x78] sm:$0xff] %v296
    %425 = vst [vmem:[#allocation5 + $0x80] sm:$0xff] %v297
    %426 = vst [vmem:[#allocation5 + $0x88] sm:$0xff] %v298
    %427 = vst [vmem:[#allocation5 + $0x90] sm:$0xff] %v299
    %428 = vst [vmem:[#allocation5 + $0x98] sm:$0xff] %v300
    %429 = vst [vmem:[#allocation5 + $0xa0] sm:$0xff] %v301
    %430 = vst [vmem:[#allocation5 + $0xa8] sm:$0xff] %v302
    %431 = vst [vmem:[#allocation5 + $0xb0] sm:$0xff] %v303
    %432 = vst [vmem:[#allocation5 + $0xb8] sm:$0xff] %v304
    %433 = vst [vmem:[#allocation5 + $0xc0] sm:$0xff] %v305
    %434 = vst [vmem:[#allocation5 + $0xc8] sm:$0xff] %v306
    %435 = vst [vmem:[#allocation5 + $0xd0] sm:$0xff] %v307
    %436 = vst [vmem:[#allocation5 + $0xd8] sm:$0xff] %v308
    %437 = vst [vmem:[#allocation5 + $0xe0] sm:$0xff] %v309
    %438 = vst [vmem:[#allocation5 + $0xe8] sm:$0xff] %v310
    %439 = vst [vmem:[#allocation5 + $0xf0] sm:$0xff] %v311
    %440 = vst [vmem:[#allocation5 + $0xf8] sm:$0xff] %v312
    %441 = vst [vmem:[#allocation5 + $0x100] sm:$0xff] %v313
    %442 = vst [vmem:[#allocation5 + $0x108] sm:$0xff] %v314
    %443 = vst [vmem:[#allocation5 + $0x110] sm:$0xff] %v315
    %444 = vst [vmem:[#allocation5 + $0x118] sm:$0xff] %v316
    %445 = vst [vmem:[#allocation5 + $0x120] sm:$0xff] %v317
    %446 = vst [vmem:[#allocation5 + $0x128] sm:$0xff] %v318
    %447 = vst [vmem:[#allocation5 + $0x130] sm:$0xff] %v319
    %448 = vst [vmem:[#allocation5 + $0x138] sm:$0xff] %v320
    %449 = vst [vmem:[#allocation5 + $0x140] sm:$0xff] %v321
    %450 = vst [vmem:[#allocation5 + $0x148] sm:$0xff] %v322
    %451 = vst [vmem:[#allocation5 + $0x150] sm:$0xff] %v323
    %452 = vst [vmem:[#allocation5 + $0x158] sm:$0xff] %v324
    %453 = vst [vmem:[#allocation5 + $0x160] sm:$0xff] %v325
    %454 = vst [vmem:[#allocation5 + $0x168] sm:$0xff] %v326
    %455 = vst [vmem:[#allocation5 + $0x170] sm:$0xff] %v327
    %456 = vst [vmem:[#allocation5 + $0x178] sm:$0xff] %v328
    %457 = vst [vmem:[#allocation5 + $0x180] sm:$0xff] %v329
    %458 = vst [vmem:[#allocation5 + $0x188] sm:$0xff] %v330
    %459 = vst [vmem:[#allocation5 + $0x190] sm:$0xff] %v331
    %460 = vst [vmem:[#allocation5 + $0x198] sm:$0xff] %v332
    %461 = vst [vmem:[#allocation5 + $0x1a0] sm:$0xff] %v333
    %462 = vst [vmem:[#allocation5 + $0x1a8] sm:$0xff] %v334
    %463 = vst [vmem:[#allocation5 + $0x1b0] sm:$0xff] %v335
    %464 = vst [vmem:[#allocation5 + $0x1b8] sm:$0xff] %v336
    %465 = vst [vmem:[#allocation5 + $0x1c0] sm:$0xff] %v337
    %466 = vst [vmem:[#allocation5 + $0x1c8] sm:$0xff] %v338
    %467 = vst [vmem:[#allocation5 + $0x1d0] sm:$0xff] %v339
    %468 = vst [vmem:[#allocation5 + $0x1d8] sm:$0xff] %v340
    %469 = vst [vmem:[#allocation5 + $0x1e0] sm:$0xff] %v341
    %470 = vst [vmem:[#allocation5 + $0x1e8] sm:$0xff] %v342
    %471 = vst [vmem:[#allocation5 + $0x1f0] sm:$0xff] %v343
    %472 = vst [vmem:[#allocation5 + $0x1f8] sm:$0xff] %v344
    %473 = vst [vmem:[#allocation5 + $0x200] sm:$0xff] %v345
    %474 = vst [vmem:[#allocation5 + $0x208] sm:$0xff] %v346
    %475 = vst [vmem:[#allocation5 + $0x210] sm:$0xff] %v347
    %476 = vst [vmem:[#allocation5 + $0x218] sm:$0xff] %v348
    %477 = vst [vmem:[#allocation5 + $0x220] sm:$0xff] %v349
    %478 = vst [vmem:[#allocation5 + $0x228] sm:$0xff] %v350
    %479 = vst [vmem:[#allocation5 + $0x230] sm:$0xff] %v351
    %480 = vst [vmem:[#allocation5 + $0x238] sm:$0xff] %v352
    %481 = vst [vmem:[#allocation5 + $0x240] sm:$0xff] %v353
    %482 = vst [vmem:[#allocation5 + $0x248] sm:$0xff] %v354
    %483 = vst [vmem:[#allocation5 + $0x250] sm:$0xff] %v355
    %484 = vst [vmem:[#allocation5 + $0x258] sm:$0xff] %v356
    %485 = vst [vmem:[#allocation5 + $0x260] sm:$0xff] %v357
    %486 = vst [vmem:[#allocation5 + $0x268] sm:$0xff] %v358
    %487 = vst [vmem:[#allocation5 + $0x270] sm:$0xff] %v359
    %488 = vst [vmem:[#allocation5 + $0x278] sm:$0xff] %v360
    %489 = vst [vmem:[#allocation5 + $0x280] sm:$0xff] %v361
    %490 = vst [vmem:[#allocation5 + $0x288] sm:$0xff] %v362
    %491 = vst [vmem:[#allocation5 + $0x290] sm:$0xff] %v363
    %492 = vst [vmem:[#allocation5 + $0x298] sm:$0xff] %v364
    %493 = vst [vmem:[#allocation5 + $0x2a0] sm:$0xff] %v365
    %494 = vst [vmem:[#allocation5 + $0x2a8] sm:$0xff] %v366
    %495 = vst [vmem:[#allocation5 + $0x2b0] sm:$0xff] %v367
    %496 = vst [vmem:[#allocation5 + $0x2b8] sm:$0xff] %v368
    %497 = vst [vmem:[#allocation5 + $0x2c0] sm:$0xff] %v369
    %498 = vst [vmem:[#allocation5 + $0x2c8] sm:$0xff] %v370
    %499 = vst [vmem:[#allocation5 + $0x2d0] sm:$0xff] %v371
    %500 = vst [vmem:[#allocation5 + $0x2d8] sm:$0xff] %v372
    %501 = vst [vmem:[#allocation5 + $0x2e0] sm:$0xff] %v373
    %502 = vst [vmem:[#allocation5 + $0x2e8] sm:$0xff] %v374
    %503 = vst [vmem:[#allocation5 + $0x2f0] sm:$0xff] %v375
    %504 = vst [vmem:[#allocation5 + $0x2f8] sm:$0xff] %v376
    %505 = vst [vmem:[#allocation5 + $0x300] sm:$0xff] %v377
    %506 = vst [vmem:[#allocation5 + $0x308] sm:$0xff] %v378
    %507 = vst [vmem:[#allocation5 + $0x310] sm:$0xff] %v379
    %508 = vst [vmem:[#allocation5 + $0x318] sm:$0xff] %v380
    %509 = vst [vmem:[#allocation5 + $0x320] sm:$0xff] %v381
    %510 = vst [vmem:[#allocation5 + $0x328] sm:$0xff] %v382
    %511 = vst [vmem:[#allocation5 + $0x330] sm:$0xff] %v383
    %512 = vst [vmem:[#allocation5 + $0x338] sm:$0xff] %v384
    %513 = vst [vmem:[#allocation5 + $0x340] sm:$0xff] %v385
    %514 = vst [vmem:[#allocation5 + $0x348] sm:$0xff] %v386
    %515 = vst [vmem:[#allocation5 + $0x350] sm:$0xff] %v387
    %516 = vst [vmem:[#allocation5 + $0x358] sm:$0xff] %v388
    %517 = vst [vmem:[#allocation5 + $0x360] sm:$0xff] %v389
    %518 = vst [vmem:[#allocation5 + $0x368] sm:$0xff] %v390
    %519 = vst [vmem:[#allocation5 + $0x370] sm:$0xff] %v391
    %520 = vst [vmem:[#allocation5 + $0x378] sm:$0xff] %v392
    %521 = vst [vmem:[#allocation5 + $0x380] sm:$0xff] %v393
    %522 = vst [vmem:[#allocation5 + $0x388] sm:$0xff] %v394
    %523 = vst [vmem:[#allocation5 + $0x390] sm:$0xff] %v395
    %524 = vst [vmem:[#allocation5 + $0x398] sm:$0xff] %v396
    %525 = vst [vmem:[#allocation5 + $0x3a0] sm:$0xff] %v397
    %526 = vst [vmem:[#allocation5 + $0x3a8] sm:$0xff] %v398
    %527 = vst [vmem:[#allocation5 + $0x3b0] sm:$0xff] %v399
    %528 = vst [vmem:[#allocation5 + $0x3b8] sm:$0xff] %v400
    %529 = vst [vmem:[#allocation5 + $0x3c0] sm:$0xff] %v401
    %530 = vst [vmem:[#allocation5 + $0x3c8] sm:$0xff] %v402
    %531 = vst [vmem:[#allocation5 + $0x3d0] sm:$0xff] %v403
    %532 = vst [vmem:[#allocation5 + $0x3d8] sm:$0xff] %v404
    %533 = vst [vmem:[#allocation5 + $0x3e0] sm:$0xff] %v405
    %534 = vst [vmem:[#allocation5 + $0x3e8] sm:$0xff] %v406
    %535 = vst [vmem:[#allocation5 + $0x3f0] sm:$0xff] %v407
    %536 = vst [vmem:[#allocation5 + $0x3f8] sm:$0xff] %v408
    // Predicated region
    $region10: #{tpu_custom_call.1} parent=1 // pred_check
      _
    $region11: #{tpu_custom_call.1} parent=1 // pred_check_branch
      %538 = sbr.rel (0) target = $region13
    $region12: #{tpu_custom_call.1} parent=1 // pred_region
      %540 = vsyncadd [#allocation4], 0
      %s541 = sshll.u32 [#allocation5], 4
      %s542 = int_to_ptr.vmem [resolvable:$true] %s541
      %s543 = sshll.u32 %s1, 4
      %s544 = int_to_ptr.hbm [resolvable:$true] %s543
      %549 = dma.vmem_to_hbm [thread:$0]  %s542, 16384, %s544, [#allocation4], 1024, 1024, 64
    $region13: #{tpu_custom_call.1} parent=1 // pred_fallthru
      _
    // Predicated region
    $region14: #{tpu_custom_call.1} parent=1 // pred_check
      _
    $region15: #{tpu_custom_call.1} parent=1 // pred_check_branch
      %551 = sbr.rel (0) target = $region17
    $region16: #{tpu_custom_call.1} parent=1 // pred_region
      %553 = dma.done [#allocation4], 16384
    $region17: #{tpu_custom_call.1} parent=1 // pred_fallthru
      _
    %554 = vsyncpa [#allocation3], 1
    %555 = vsyncpa [#allocation4], 1

</llo_original>
